<compile_context>
chip_gen: v7x
topology: tpu7x:2x2x1
jax: 0.10.0
libtpu: 0.0.40
codegen_flags: <defaults>
</compile_context>

<pallas_src>
import jax
import jax.numpy as jnp
from jax.experimental import pallas as pl
from jax.experimental.pallas import tpu as pltpu

EPS = 1e-5
LANE = 128


def _round_up(n, m=LANE):
    return ((n + m - 1) // m) * m


def _bn_relu(h, gamma, beta, inv_b):
    """BatchNorm1d (batch stats, biased var) + affine + ReLU, single elementwise pass, f32.

    Reductions fused: two sums, scaled once by 1/B. rsqrt -> EUP (free slot)."""
    s1 = jnp.sum(h, axis=0, keepdims=True)
    s2 = jnp.sum(h * h, axis=0, keepdims=True)
    mu = s1 * inv_b
    var = jnp.maximum(s2 * inv_b - mu * mu, 0.0)   # single-pass var; clamped against cancellation
    scale = gamma * jax.lax.rsqrt(var + EPS)
    shift = beta - mu * scale
    return jnp.maximum(h * scale + shift, 0.0)


def make_mlp_kernel(batch, h1p, h2p, h3p, outp):
    inv_b = 1.0 / float(batch)

    # Static offsets into the packed small-param vector: [g1, be1, g2, be2, g3, be3, b4].
    o_g1 = 0
    o_b1 = o_g1 + h1p
    o_g2 = o_b1 + h1p
    o_b2 = o_g2 + h2p
    o_g3 = o_b2 + h2p
    o_b3 = o_g3 + h3p
    o_b4 = o_b3 + h3p

    # Static column offsets into the packed weight slab [w2 | w3 | w4] (all share K = h1p rows).
    c_w2 = 0
    c_w3 = c_w2 + h2p
    c_w4 = c_w3 + h3p
    c_end = c_w4 + outp

    def mlp_kernel(x_ref, w1_ref, wpk_ref, p_ref, o_ref):
        # All slices below are static and 128-lane-aligned -> free (no VMEM copies).
        g1, be1 = p_ref[:, o_g1:o_b1], p_ref[:, o_b1:o_g2]
        g2, be2 = p_ref[:, o_g2:o_b2], p_ref[:, o_b2:o_g3]
        g3, be3 = p_ref[:, o_g3:o_b3], p_ref[:, o_b3:o_b4]
        b4 = p_ref[:, o_b4:o_b4 + outp]

        w2 = wpk_ref[:, c_w2:c_w3]
        w3 = wpk_ref[:, c_w3:c_w4]
        w4 = wpk_ref[:, c_w4:c_end]

        # x arrives already bf16; all dots are bf16 x bf16 -> f32 MXU accumulate.
        h = _bn_relu(jnp.dot(x_ref[...], w1_ref[...],
                             preferred_element_type=jnp.float32), g1, be1, inv_b)
        h = _bn_relu(jnp.dot(h.astype(jnp.bfloat16), w2,
                             preferred_element_type=jnp.float32), g2, be2, inv_b)
        h = _bn_relu(jnp.dot(h.astype(jnp.bfloat16), w3,
                             preferred_element_type=jnp.float32), g3, be3, inv_b)
        out = jnp.dot(h.astype(jnp.bfloat16), w4,
                      preferred_element_type=jnp.float32) + b4
        o_ref[...] = out.astype(o_ref.dtype)       # lane-dense (B, outp) unmasked store

    return mlp_kernel


def init_params(key, input_size, lin1, lin2, lin3, output_size):
    """f32 master params, PyTorch-style init: Linear W,b ~ U(-1/sqrt(fan_in), 1/sqrt(fan_in));
    BatchNorm gamma=1, beta=0. Weights stored as (in, out)."""
    dims = [(input_size, lin1), (lin1, lin2), (lin2, lin3), (lin3, output_size)]
    params = []
    keys = jax.random.split(key, 2 * len(dims))
    for i, (fan_in, fan_out) in enumerate(dims):
        bound = 1.0 / jnp.sqrt(jnp.float32(fan_in))
        w = jax.random.uniform(keys[2 * i], (fan_in, fan_out), jnp.float32, -bound, bound)
        b = jax.random.uniform(keys[2 * i + 1], (1, fan_out), jnp.float32, -bound, bound)
        params.append(w)
        params.append(b)
        if i < 3:  # BN after first three linears
            params.append(jnp.ones((1, fan_out), jnp.float32))   # gamma
            params.append(jnp.zeros((1, fan_out), jnp.float32))  # beta
    return tuple(params)  # (w1,b1,g1,be1, w2,b2,g2,be2, w3,b3,g3,be3, w4,b4)


def prepare_kernel_params(params, input_size):
    """Pad feature dims to 128, cast weights to bf16, pack w2/w3/w4 into one slab and all small
    vectors into one f32 array. b1/b2/b3 are dropped (cancelled by BN mean subtraction)."""
    (w1, b1, g1, be1, w2, b2, g2, be2, w3, b3, g3, be3, w4, b4) = params
    dp = _round_up(input_size)
    h1p, h2p, h3p = _round_up(w1.shape[1]), _round_up(w2.shape[1]), _round_up(w3.shape[1])
    outp = _round_up(w4.shape[1])
    # Packing w2/w3/w4 along the lane axis requires a common K; holds for this module
    # (lin1 == lin2 == lin3 by default and in the demo).
    assert h1p == h2p == h3p, "hidden padded widths must match to pack w2/w3/w4"

    def pad_w(w, rp, cp):
        r, c = w.shape
        return jnp.pad(w, ((0, rp - r), (0, cp - c))).astype(jnp.bfloat16)

    def pad_v(v, cp):
        v = v.reshape(1, -1)
        return jnp.pad(v, ((0, 0), (0, cp - v.shape[1])))

    w1p = pad_w(w1, dp, h1p)
    wpk = jnp.concatenate(
        [pad_w(w2, h1p, h2p), pad_w(w3, h2p, h3p), pad_w(w4, h3p, outp)], axis=1)
    packed = jnp.concatenate(
        [pad_v(g1, h1p), pad_v(be1, h1p),
         pad_v(g2, h2p), pad_v(be2, h2p),
         pad_v(g3, h3p), pad_v(be3, h3p),
         pad_v(b4, outp)], axis=1).astype(jnp.float32)

    return (w1p, wpk, packed), (dp, h1p, h2p, h3p, outp)


def simple_dense_net_forward(x_nchw, kparams, dims, output_size):
    w1p, wpk, packed = kparams
    dp, h1p, h2p, h3p, outp = dims
    b = x_nchw.shape[0]

    # Flatten (B,C,H,W) -> (B, C*H*W), pad the feature axis to 128, ship as bf16 (one cast, in
    # the wrapper, fused with the pad) so the kernel's first dot starts immediately.
    x = x_nchw.reshape(b, -1).astype(jnp.float32)
    if x.shape[1] != dp:
        x = jnp.pad(x, ((0, 0), (0, dp - x.shape[1])))
    x = x.astype(jnp.bfloat16)

    kernel = make_mlp_kernel(b, h1p, h2p, h3p, outp)

    flops = 2 * b * (dp * h1p + h1p * h2p + h2p * h3p + h3p * outp) \
        + 10 * b * (h1p + h2p + h3p)                      # matmuls + BN/ReLU elementwise
    bytes_accessed = (b * dp * 2 + dp * h1p * 2 + wpk.size * 2
                      + packed.size * 4 + b * outp * 4)
    cost = pl.CostEstimate(flops=int(flops),
                           transcendentals=int(h1p + h2p + h3p),
                           bytes_accessed=int(bytes_accessed))

    vmem = pl.BlockSpec(memory_space=pltpu.MemorySpace.VMEM)
    # Tiny problem, single invocation: no grid, every array one whole-extent VMEM block.
    out = pl.pallas_call(
        kernel,
        out_shape=jax.ShapeDtypeStruct((b, outp), jnp.float32),
        in_specs=[vmem, vmem, vmem, vmem],
        out_specs=vmem,
        cost_estimate=cost,
    )(x, w1p, wpk, packed)
    return out[:, :output_size]


def reference_forward(x_nchw, params):
    """Full PyTorch-module math in f32 (with b1/b2/b3, two-pass BN stats, unpadded), using the
    same bf16-quantized weight/input values the kernel sees."""
    (w1, b1, g1, be1, w2, b2, g2, be2, w3, b3, g3, be3, w4, b4) = params

    def q(a):  # same bf16 storage/cast the kernel uses for MXU inputs
        return a.astype(jnp.bfloat16).astype(jnp.float32)

    x = q(x_nchw.reshape(x_nchw.shape[0], -1).astype(jnp.float32))

    def blk(h, w, b, g, be):
        h = h @ q(w) + b          # bias kept here; cancelled by the mean subtraction below
        mu = h.mean(0, keepdims=True)
        var = ((h - mu) ** 2).mean(0, keepdims=True)
        return jnp.maximum((h - mu) / jnp.sqrt(var + EPS) * g + be, 0.0)

    h = blk(x, w1, b1, g1, be1)
    h = blk(h, w2, b2, g2, be2)
    h = blk(h, w3, b3, g3, be3)
    return h @ q(w4) + b4


if __name__ == "__main__":
    # Batch raised to 128 per perf feedback (M >= 128 fills the MXU / amortizes fixed overhead);
    # feature dims stay small and consistent with the module: input_size = C*H*W = 256.
    B, C, H, W = 128, 1, 16, 16
    LIN1 = LIN2 = LIN3 = 64
    OUT = 10

    key = jax.random.PRNGKey(0)
    kx, kp = jax.random.split(key)
    x = jax.random.normal(kx, (B, C, H, W), dtype=jnp.float32)

    params = init_params(kp, C * H * W, LIN1, LIN2, LIN3, OUT)
    kparams, dims = prepare_kernel_params(params, C * H * W)

    y = simple_dense_net_forward(x, kparams, dims, OUT)
    y = jax.block_until_ready(y)

    y_ref = reference_forward(x, params)
    assert y.shape == (B, OUT)
    # Tolerance accounts for bf16 activation casts feeding the MXU (f32 accumulate); the
    # structural transforms (padding, packing, bias dropping, fused single-pass BN) are exact.
    assert jnp.allclose(y, y_ref, atol=5e-2, rtol=5e-2), float(jnp.max(jnp.abs(y - y_ref)))

    print("KERNEL_OK")
</pallas_src>

<mosaic_0001>
module attributes {stable_mosaic.version = 11 : i64} {
  func.func @mlp_kernel(%arg0: memref<128x256xbf16, #tpu.memory_space<vmem>>, %arg1: memref<256x128xbf16, #tpu.memory_space<vmem>>, %arg2: memref<128x384xbf16, #tpu.memory_space<vmem>>, %arg3: memref<1x896xf32, #tpu.memory_space<vmem>>, %arg4: memref<128x128xf32, #tpu.memory_space<vmem>>) attributes {dimension_semantics = [], scalar_prefetch = 0 : i64, scratch_operands = 0 : i64, tpu.core_type = #tpu.core_type<tc>} {
    %c0 = arith.constant 0 : index
    %c0_0 = arith.constant 0 : index
    %0 = vector.load %arg3[%c0, %c0_0] : memref<1x896xf32, #tpu.memory_space<vmem>>, vector<1x128xf32>
    %c0_1 = arith.constant 0 : index
    %c128 = arith.constant 128 : index
    %1 = vector.load %arg3[%c0_1, %c128] : memref<1x896xf32, #tpu.memory_space<vmem>>, vector<1x128xf32>
    %c0_2 = arith.constant 0 : index
    %c256 = arith.constant 256 : index
    %2 = vector.load %arg3[%c0_2, %c256] : memref<1x896xf32, #tpu.memory_space<vmem>>, vector<1x128xf32>
    %c0_3 = arith.constant 0 : index
    %c384 = arith.constant 384 : index
    %3 = vector.load %arg3[%c0_3, %c384] : memref<1x896xf32, #tpu.memory_space<vmem>>, vector<1x128xf32>
    %c0_4 = arith.constant 0 : index
    %c512 = arith.constant 512 : index
    %4 = vector.load %arg3[%c0_4, %c512] : memref<1x896xf32, #tpu.memory_space<vmem>>, vector<1x128xf32>
    %c0_5 = arith.constant 0 : index
    %c640 = arith.constant 640 : index
    %5 = vector.load %arg3[%c0_5, %c640] : memref<1x896xf32, #tpu.memory_space<vmem>>, vector<1x128xf32>
    %c0_6 = arith.constant 0 : index
    %c768 = arith.constant 768 : index
    %6 = vector.load %arg3[%c0_6, %c768] : memref<1x896xf32, #tpu.memory_space<vmem>>, vector<1x128xf32>
    %c0_7 = arith.constant 0 : index
    %c0_8 = arith.constant 0 : index
    %7 = vector.load %arg2[%c0_7, %c0_8] : memref<128x384xbf16, #tpu.memory_space<vmem>>, vector<128x128xbf16>
    %c0_9 = arith.constant 0 : index
    %c128_10 = arith.constant 128 : index
    %8 = vector.load %arg2[%c0_9, %c128_10] : memref<128x384xbf16, #tpu.memory_space<vmem>>, vector<128x128xbf16>
    %c0_11 = arith.constant 0 : index
    %c256_12 = arith.constant 256 : index
    %9 = vector.load %arg2[%c0_11, %c256_12] : memref<128x384xbf16, #tpu.memory_space<vmem>>, vector<128x128xbf16>
    %c0_13 = arith.constant 0 : index
    %c0_14 = arith.constant 0 : index
    %10 = vector.load %arg0[%c0_13, %c0_14] : memref<128x256xbf16, #tpu.memory_space<vmem>>, vector<128x256xbf16>
    %c0_15 = arith.constant 0 : index
    %c0_16 = arith.constant 0 : index
    %11 = vector.load %arg1[%c0_15, %c0_16] : memref<256x128xbf16, #tpu.memory_space<vmem>>, vector<256x128xbf16>
    %cst = arith.constant dense<0.000000e+00> : vector<128x128xf32>
    %12 = tpu.matmul %10, %11, %cst {dimension_numbers = #tpu.dot_dimension_numbers<[1], [0], [0], [1], [0, 0, 1, 1], [], []>} : vector<128x256xbf16>, vector<256x128xbf16>, vector<128x128xf32> -> vector<128x128xf32>
    %cst_17 = arith.constant dense<0.000000e+00> : vector<128xf32>
    %13 = vector.multi_reduction <add>, %12, %cst_17 [0] : vector<128x128xf32> to vector<128xf32>
    %14 = vector.shape_cast %13 : vector<128xf32> to vector<1x128xf32>
    %15 = arith.mulf %12, %12 : vector<128x128xf32>
    %cst_18 = arith.constant dense<0.000000e+00> : vector<128xf32>
    %16 = vector.multi_reduction <add>, %15, %cst_18 [0] : vector<128x128xf32> to vector<128xf32>
    %17 = vector.shape_cast %16 : vector<128xf32> to vector<1x128xf32>
    %cst_19 = arith.constant 7.812500e-03 : f32
    %18 = vector.broadcast %cst_19 : f32 to vector<1x128xf32>
    %19 = arith.mulf %14, %18 : vector<1x128xf32>
    %cst_20 = arith.constant 7.812500e-03 : f32
    %20 = vector.broadcast %cst_20 : f32 to vector<1x128xf32>
    %21 = arith.mulf %17, %20 : vector<1x128xf32>
    %22 = arith.mulf %19, %19 : vector<1x128xf32>
    %23 = arith.subf %21, %22 : vector<1x128xf32>
    %cst_21 = arith.constant 0.000000e+00 : f32
    %24 = vector.broadcast %cst_21 : f32 to vector<1x128xf32>
    %25 = arith.maximumf %23, %24 : vector<1x128xf32>
    %cst_22 = arith.constant 9.99999974E-6 : f32
    %26 = vector.broadcast %cst_22 : f32 to vector<1x128xf32>
    %27 = arith.addf %25, %26 : vector<1x128xf32>
    %28 = math.rsqrt %27 : vector<1x128xf32>
    %29 = arith.mulf %0, %28 : vector<1x128xf32>
    %30 = arith.mulf %19, %29 : vector<1x128xf32>
    %31 = arith.subf %1, %30 : vector<1x128xf32>
    %32 = vector.broadcast %29 : vector<1x128xf32> to vector<128x128xf32>
    %33 = arith.mulf %12, %32 : vector<128x128xf32>
    %34 = vector.broadcast %31 : vector<1x128xf32> to vector<128x128xf32>
    %35 = arith.addf %33, %34 : vector<128x128xf32>
    %cst_23 = arith.constant 0.000000e+00 : f32
    %36 = vector.broadcast %cst_23 : f32 to vector<128x128xf32>
    %37 = arith.maximumf %35, %36 : vector<128x128xf32>
    %38 = arith.truncf %37 : vector<128x128xf32> to vector<128x128xbf16>
    %cst_24 = arith.constant dense<0.000000e+00> : vector<128x128xf32>
    %39 = tpu.matmul %38, %7, %cst_24 {dimension_numbers = #tpu.dot_dimension_numbers<[1], [0], [0], [1], [0, 0, 1, 1], [], []>} : vector<128x128xbf16>, vector<128x128xbf16>, vector<128x128xf32> -> vector<128x128xf32>
    %cst_25 = arith.constant dense<0.000000e+00> : vector<128xf32>
    %40 = vector.multi_reduction <add>, %39, %cst_25 [0] : vector<128x128xf32> to vector<128xf32>
    %41 = vector.shape_cast %40 : vector<128xf32> to vector<1x128xf32>
    %42 = arith.mulf %39, %39 : vector<128x128xf32>
    %cst_26 = arith.constant dense<0.000000e+00> : vector<128xf32>
    %43 = vector.multi_reduction <add>, %42, %cst_26 [0] : vector<128x128xf32> to vector<128xf32>
    %44 = vector.shape_cast %43 : vector<128xf32> to vector<1x128xf32>
    %cst_27 = arith.constant 7.812500e-03 : f32
    %45 = vector.broadcast %cst_27 : f32 to vector<1x128xf32>
    %46 = arith.mulf %41, %45 : vector<1x128xf32>
    %cst_28 = arith.constant 7.812500e-03 : f32
    %47 = vector.broadcast %cst_28 : f32 to vector<1x128xf32>
    %48 = arith.mulf %44, %47 : vector<1x128xf32>
    %49 = arith.mulf %46, %46 : vector<1x128xf32>
    %50 = arith.subf %48, %49 : vector<1x128xf32>
    %cst_29 = arith.constant 0.000000e+00 : f32
    %51 = vector.broadcast %cst_29 : f32 to vector<1x128xf32>
    %52 = arith.maximumf %50, %51 : vector<1x128xf32>
    %cst_30 = arith.constant 9.99999974E-6 : f32
    %53 = vector.broadcast %cst_30 : f32 to vector<1x128xf32>
    %54 = arith.addf %52, %53 : vector<1x128xf32>
    %55 = math.rsqrt %54 : vector<1x128xf32>
    %56 = arith.mulf %2, %55 : vector<1x128xf32>
    %57 = arith.mulf %46, %56 : vector<1x128xf32>
    %58 = arith.subf %3, %57 : vector<1x128xf32>
    %59 = vector.broadcast %56 : vector<1x128xf32> to vector<128x128xf32>
    %60 = arith.mulf %39, %59 : vector<128x128xf32>
    %61 = vector.broadcast %58 : vector<1x128xf32> to vector<128x128xf32>
    %62 = arith.addf %60, %61 : vector<128x128xf32>
    %cst_31 = arith.constant 0.000000e+00 : f32
    %63 = vector.broadcast %cst_31 : f32 to vector<128x128xf32>
    %64 = arith.maximumf %62, %63 : vector<128x128xf32>
    %65 = arith.truncf %64 : vector<128x128xf32> to vector<128x128xbf16>
    %cst_32 = arith.constant dense<0.000000e+00> : vector<128x128xf32>
    %66 = tpu.matmul %65, %8, %cst_32 {dimension_numbers = #tpu.dot_dimension_numbers<[1], [0], [0], [1], [0, 0, 1, 1], [], []>} : vector<128x128xbf16>, vector<128x128xbf16>, vector<128x128xf32> -> vector<128x128xf32>
    %cst_33 = arith.constant dense<0.000000e+00> : vector<128xf32>
    %67 = vector.multi_reduction <add>, %66, %cst_33 [0] : vector<128x128xf32> to vector<128xf32>
    %68 = vector.shape_cast %67 : vector<128xf32> to vector<1x128xf32>
    %69 = arith.mulf %66, %66 : vector<128x128xf32>
    %cst_34 = arith.constant dense<0.000000e+00> : vector<128xf32>
    %70 = vector.multi_reduction <add>, %69, %cst_34 [0] : vector<128x128xf32> to vector<128xf32>
    %71 = vector.shape_cast %70 : vector<128xf32> to vector<1x128xf32>
    %cst_35 = arith.constant 7.812500e-03 : f32
    %72 = vector.broadcast %cst_35 : f32 to vector<1x128xf32>
    %73 = arith.mulf %68, %72 : vector<1x128xf32>
    %cst_36 = arith.constant 7.812500e-03 : f32
    %74 = vector.broadcast %cst_36 : f32 to vector<1x128xf32>
    %75 = arith.mulf %71, %74 : vector<1x128xf32>
    %76 = arith.mulf %73, %73 : vector<1x128xf32>
    %77 = arith.subf %75, %76 : vector<1x128xf32>
    %cst_37 = arith.constant 0.000000e+00 : f32
    %78 = vector.broadcast %cst_37 : f32 to vector<1x128xf32>
    %79 = arith.maximumf %77, %78 : vector<1x128xf32>
    %cst_38 = arith.constant 9.99999974E-6 : f32
    %80 = vector.broadcast %cst_38 : f32 to vector<1x128xf32>
    %81 = arith.addf %79, %80 : vector<1x128xf32>
    %82 = math.rsqrt %81 : vector<1x128xf32>
    %83 = arith.mulf %4, %82 : vector<1x128xf32>
    %84 = arith.mulf %73, %83 : vector<1x128xf32>
    %85 = arith.subf %5, %84 : vector<1x128xf32>
    %86 = vector.broadcast %83 : vector<1x128xf32> to vector<128x128xf32>
    %87 = arith.mulf %66, %86 : vector<128x128xf32>
    %88 = vector.broadcast %85 : vector<1x128xf32> to vector<128x128xf32>
    %89 = arith.addf %87, %88 : vector<128x128xf32>
    %cst_39 = arith.constant 0.000000e+00 : f32
    %90 = vector.broadcast %cst_39 : f32 to vector<128x128xf32>
    %91 = arith.maximumf %89, %90 : vector<128x128xf32>
    %92 = arith.truncf %91 : vector<128x128xf32> to vector<128x128xbf16>
    %cst_40 = arith.constant dense<0.000000e+00> : vector<128x128xf32>
    %93 = tpu.matmul %92, %9, %cst_40 {dimension_numbers = #tpu.dot_dimension_numbers<[1], [0], [0], [1], [0, 0, 1, 1], [], []>} : vector<128x128xbf16>, vector<128x128xbf16>, vector<128x128xf32> -> vector<128x128xf32>
    %94 = vector.broadcast %6 : vector<1x128xf32> to vector<128x128xf32>
    %95 = arith.addf %93, %94 : vector<128x128xf32>
    %c0_41 = arith.constant 0 : index
    %c0_42 = arith.constant 0 : index
    %96 = vector.load %arg4[%c0_41, %c0_42] : memref<128x128xf32, #tpu.memory_space<vmem>>, vector<128x128xf32>
    tpu.vector_store %arg4[%c0_41, %c0_42], %95 {strides = array<i32>} : memref<128x128xf32, #tpu.memory_space<vmem>>, vector<128x128xf32>,
    return
  }
}

</mosaic_0001>

<llo_original>
// kernel: tpu_custom_call.1
$region0: #{tpu_custom_call.1}
  #allocation0 [shape = 'u32[]', space=smem, size = 0x4, offset = 0x4, fixed_abs, tag = 'smem constant byte address 0x4 - core index']
  #allocation1 [shape = 'u32[144,128]{1,0:T(1,128)}', space=vmem, size = 0x12000, scoped, tag = 'internal scratch']
  %s0 = inlined_call_operand.hbm [shape: bf16[128,256], index: 0, kind: input, shape index: {}]
  %s1 = inlined_call_operand.hbm [shape: bf16[256,128], index: 1, kind: input, shape index: {}]
  %s2 = inlined_call_operand.hbm [shape: bf16[128,384], index: 2, kind: input, shape index: {}]
  %s3 = inlined_call_operand.vmem [shape: f32[1,896], index: 3, kind: input, shape index: {}]
  %s4 = inlined_call_operand.hbm [shape: f32[128,128], index: 4, kind: output, shape index: {}]
  %s5 = sld [smem:[#allocation0]]
  $region38: #{tpu_custom_call.1} parent=0
    _
  %s7 = ssub.s32 1, %s5
  %s8 = scalar_select 0, %s7, %s5
  $region1: #{tpu_custom_call.1} parent=0
    #allocation2 [shape = 'u8[65536]{0}', space=vmem, size = 0x10000, scoped, tag = 'input window, operand 0, single buffered']
    #allocation3 [shape = 's32[1]{0}', space=sflag, size = 0x4, scoped, tag = 'scoped memory for tpu_custom_call.1']
    #allocation4 [shape = 's32[1]{0}', space=sflag, size = 0x4, scoped, tag = 'scoped memory for tpu_custom_call.1']
    #allocation5 [shape = 'u8[65536]{0}', space=vmem, size = 0x10000, scoped, tag = 'input window, operand 1, single buffered']
    #allocation6 [shape = 's32[1]{0}', space=sflag, size = 0x4, scoped, tag = 'scoped memory for tpu_custom_call.1']
    #allocation7 [shape = 'u8[98304]{0}', space=vmem, size = 0x18000, scoped, tag = 'input window, operand 2, single buffered']
    #allocation8 [shape = 'u8[65536]{0}', space=vmem, size = 0x10000, scoped, tag = 'output window, operand 0, single buffered']
    %9 = vsyncpa [#allocation3], 0
    %10 = vsyncpa [#allocation6], 0
    %11 = vsyncpa [#allocation4], 0
    // Predicated region
    $region2: #{tpu_custom_call.1} parent=1 // pred_check
      _
    $region3: #{tpu_custom_call.1} parent=1 // pred_check_branch
      %13 = sbr.rel (0) target = $region5
    $region4: #{tpu_custom_call.1} parent=1 // pred_region
      %s15 = ssub.s32 2048, 2048
      %16 = vsyncadd [#allocation3], %s15
      %s17 = sshll.u32 [#allocation2], 4
      %s18 = int_to_ptr.vmem [resolvable:$true] %s17
      %23 = dma.hbm_to_vmem [thread:$0]  %s0, 2048, %s18, [#allocation3], 128, 128, 8
    $region5: #{tpu_custom_call.1} parent=1 // pred_fallthru
      _
    // Predicated region
    $region6: #{tpu_custom_call.1} parent=1 // pred_check
      _
    $region7: #{tpu_custom_call.1} parent=1 // pred_check_branch
      %25 = sbr.rel (0) target = $region9
    $region8: #{tpu_custom_call.1} parent=1 // pred_region
      %s27 = ssub.s32 2048, 2048
      %28 = vsyncadd [#allocation6], %s27
      %s29 = sshll.u32 [#allocation5], 4
      %s30 = int_to_ptr.vmem [resolvable:$true] %s29
      %35 = dma.hbm_to_vmem [thread:$0]  %s1, 2048, %s30, [#allocation6], 64, 64, 4
    $region9: #{tpu_custom_call.1} parent=1 // pred_fallthru
      _
    // Predicated region
    $region10: #{tpu_custom_call.1} parent=1 // pred_check
      _
    $region11: #{tpu_custom_call.1} parent=1 // pred_check_branch
      %37 = sbr.rel (0) target = $region13
    $region12: #{tpu_custom_call.1} parent=1 // pred_region
      %s39 = ssub.s32 3072, 3072
      %40 = vsyncadd [#allocation6], %s39
      %s41 = sshll.u32 [#allocation7], 4
      %s42 = int_to_ptr.vmem [resolvable:$true] %s41
      %47 = dma.hbm_to_vmem [thread:$0]  %s2, 3072, %s42, [#allocation6], 192, 192, 12
    $region13: #{tpu_custom_call.1} parent=1 // pred_fallthru
      _
    // Predicated region
    $region14: #{tpu_custom_call.1} parent=1 // pred_check
      _
    $region15: #{tpu_custom_call.1} parent=1 // pred_check_branch
      %49 = sbr.rel (0) target = $region17
    $region16: #{tpu_custom_call.1} parent=1 // pred_region
      _
    $region17: #{tpu_custom_call.1} parent=1 // pred_fallthru
      _
    // Predicated region
    $region18: #{tpu_custom_call.1} parent=1 // pred_check
      _
    $region19: #{tpu_custom_call.1} parent=1 // pred_check_branch
      %51 = sbr.rel (0) target = $region21
    $region20: #{tpu_custom_call.1} parent=1 // pred_region
      %52 = dma.done [#allocation3], 2048
    $region21: #{tpu_custom_call.1} parent=1 // pred_fallthru
      _
    // Predicated region
    $region22: #{tpu_custom_call.1} parent=1 // pred_check
      _
    $region23: #{tpu_custom_call.1} parent=1 // pred_check_branch
      %54 = sbr.rel (0) target = $region25
    $region24: #{tpu_custom_call.1} parent=1 // pred_region
      %55 = dma.done [#allocation6], 2048
    $region25: #{tpu_custom_call.1} parent=1 // pred_fallthru
      _
    // Predicated region
    $region26: #{tpu_custom_call.1} parent=1 // pred_check
      _
    $region27: #{tpu_custom_call.1} parent=1 // pred_check_branch
      %57 = sbr.rel (0) target = $region29
    $region28: #{tpu_custom_call.1} parent=1 // pred_region
      %58 = dma.done [#allocation6], 3072
    $region29: #{tpu_custom_call.1} parent=1 // pred_fallthru
      _
    %v60 = vld [vmem:[%s3] sm:$0x1]
    %v61 = vld [vmem:[%s3 + $0x1] sm:$0x1]
    %v62 = vld [vmem:[%s3 + $0x2] sm:$0x1]
    %v63 = vld [vmem:[%s3 + $0x3] sm:$0x1]
    %v64 = vld [vmem:[%s3 + $0x4] sm:$0x1]
    %v65 = vld [vmem:[%s3 + $0x5] sm:$0x1]
    %v66 = vld [vmem:[%s3 + $0x6] sm:$0x1]
    %v67 = vld [vmem:[#allocation7] sm:$0xf]
    %v68 = vld [vmem:[#allocation7 + $0xc] sm:$0xf]
    %v69 = vld [vmem:[#allocation7 + $0x18] sm:$0xf]
    %v70 = vld [vmem:[#allocation7 + $0x24] sm:$0xf]
    %v71 = vld [vmem:[#allocation7 + $0x30] sm:$0xf]
    %v72 = vld [vmem:[#allocation7 + $0x3c] sm:$0xf]
    %v73 = vld [vmem:[#allocation7 + $0x48] sm:$0xf]
    %v74 = vld [vmem:[#allocation7 + $0x54] sm:$0xf]
    %v75 = vld [vmem:[#allocation7 + $0x60] sm:$0xf]
    %v76 = vld [vmem:[#allocation7 + $0x6c] sm:$0xf]
    %v77 = vld [vmem:[#allocation7 + $0x78] sm:$0xf]
    %v78 = vld [vmem:[#allocation7 + $0x84] sm:$0xf]
    %v79 = vld [vmem:[#allocation7 + $0x90] sm:$0xf]
    %v80 = vld [vmem:[#allocation7 + $0x9c] sm:$0xf]
    %v81 = vld [vmem:[#allocation7 + $0xa8] sm:$0xf]
    %v82 = vld [vmem:[#allocation7 + $0xb4] sm:$0xf]
    %v83 = vld [vmem:[#allocation7 + $0x4] sm:$0xf]
    %v84 = vld [vmem:[#allocation7 + $0x10] sm:$0xf]
    %v85 = vld [vmem:[#allocation7 + $0x1c] sm:$0xf]
    %v86 = vld [vmem:[#allocation7 + $0x28] sm:$0xf]
    %v87 = vld [vmem:[#allocation7 + $0x34] sm:$0xf]
    %v88 = vld [vmem:[#allocation7 + $0x40] sm:$0xf]
    %v89 = vld [vmem:[#allocation7 + $0x4c] sm:$0xf]
    %v90 = vld [vmem:[#allocation7 + $0x58] sm:$0xf]
    %v91 = vld [vmem:[#allocation7 + $0x64] sm:$0xf]
    %v92 = vld [vmem:[#allocation7 + $0x70] sm:$0xf]
    %v93 = vld [vmem:[#allocation7 + $0x7c] sm:$0xf]
    %v94 = vld [vmem:[#allocation7 + $0x88] sm:$0xf]
    %v95 = vld [vmem:[#allocation7 + $0x94] sm:$0xf]
    %v96 = vld [vmem:[#allocation7 + $0xa0] sm:$0xf]
    %v97 = vld [vmem:[#allocation7 + $0xac] sm:$0xf]
    %v98 = vld [vmem:[#allocation7 + $0xb8] sm:$0xf]
    %v99 = vld [vmem:[#allocation7 + $0x8] sm:$0xf]
    %v100 = vld [vmem:[#allocation7 + $0x14] sm:$0xf]
    %v101 = vld [vmem:[#allocation7 + $0x20] sm:$0xf]
    %v102 = vld [vmem:[#allocation7 + $0x2c] sm:$0xf]
    %v103 = vld [vmem:[#allocation7 + $0x38] sm:$0xf]
    %v104 = vld [vmem:[#allocation7 + $0x44] sm:$0xf]
    %v105 = vld [vmem:[#allocation7 + $0x50] sm:$0xf]
    %v106 = vld [vmem:[#allocation7 + $0x5c] sm:$0xf]
    %v107 = vld [vmem:[#allocation7 + $0x68] sm:$0xf]
    %v108 = vld [vmem:[#allocation7 + $0x74] sm:$0xf]
    %v109 = vld [vmem:[#allocation7 + $0x80] sm:$0xf]
    %v110 = vld [vmem:[#allocation7 + $0x8c] sm:$0xf]
    %v111 = vld [vmem:[#allocation7 + $0x98] sm:$0xf]
    %v112 = vld [vmem:[#allocation7 + $0xa4] sm:$0xf]
    %v113 = vld [vmem:[#allocation7 + $0xb0] sm:$0xf]
    %v114 = vld [vmem:[#allocation7 + $0xbc] sm:$0xf]
    %v115 = vld [vmem:[#allocation2] sm:$0xff]
    %v116 = vld [vmem:[#allocation2 + $0x8] sm:$0xff]
    %v117 = vld [vmem:[#allocation2 + $0x10] sm:$0xff]
    %v118 = vld [vmem:[#allocation2 + $0x18] sm:$0xff]
    %v119 = vld [vmem:[#allocation2 + $0x20] sm:$0xff]
    %v120 = vld [vmem:[#allocation2 + $0x28] sm:$0xff]
    %v121 = vld [vmem:[#allocation2 + $0x30] sm:$0xff]
    %v122 = vld [vmem:[#allocation2 + $0x38] sm:$0xff]
    %v123 = vld [vmem:[#allocation2 + $0x40] sm:$0xff]
    %v124 = vld [vmem:[#allocation2 + $0x48] sm:$0xff]
    %v125 = vld [vmem:[#allocation2 + $0x50] sm:$0xff]
    %v126 = vld [vmem:[#allocation2 + $0x58] sm:$0xff]
    %v127 = vld [vmem:[#allocation2 + $0x60] sm:$0xff]
    %v128 = vld [vmem:[#allocation2 + $0x68] sm:$0xff]
    %v129 = vld [vmem:[#allocation2 + $0x70] sm:$0xff]
    %v130 = vld [vmem:[#allocation2 + $0x78] sm:$0xff]
    %v131 = vld [vmem:[#allocation5] sm:$0xf]
    %v132 = vld [vmem:[#allocation5 + $0x4] sm:$0xf]
    %v133 = vld [vmem:[#allocation5 + $0x8] sm:$0xf]
    %v134 = vld [vmem:[#allocation5 + $0xc] sm:$0xf]
    %v135 = vld [vmem:[#allocation5 + $0x10] sm:$0xf]
    %v136 = vld [vmem:[#allocation5 + $0x14] sm:$0xf]
    %v137 = vld [vmem:[#allocation5 + $0x18] sm:$0xf]
    %v138 = vld [vmem:[#allocation5 + $0x1c] sm:$0xf]
    %v139 = vld [vmem:[#allocation5 + $0x20] sm:$0xf]
    %v140 = vld [vmem:[#allocation5 + $0x24] sm:$0xf]
    %v141 = vld [vmem:[#allocation5 + $0x28] sm:$0xf]
    %v142 = vld [vmem:[#allocation5 + $0x2c] sm:$0xf]
    %v143 = vld [vmem:[#allocation5 + $0x30] sm:$0xf]
    %v144 = vld [vmem:[#allocation5 + $0x34] sm:$0xf]
    %v145 = vld [vmem:[#allocation5 + $0x38] sm:$0xf]
    %v146 = vld [vmem:[#allocation5 + $0x3c] sm:$0xf]
    %v147 = vld [vmem:[#allocation5 + $0x40] sm:$0xf]
    %v148 = vld [vmem:[#allocation5 + $0x44] sm:$0xf]
    %v149 = vld [vmem:[#allocation5 + $0x48] sm:$0xf]
    %v150 = vld [vmem:[#allocation5 + $0x4c] sm:$0xf]
    %v151 = vld [vmem:[#allocation5 + $0x50] sm:$0xf]
    %v152 = vld [vmem:[#allocation5 + $0x54] sm:$0xf]
    %v153 = vld [vmem:[#allocation5 + $0x58] sm:$0xf]
    %v154 = vld [vmem:[#allocation5 + $0x5c] sm:$0xf]
    %v155 = vld [vmem:[#allocation5 + $0x60] sm:$0xf]
    %v156 = vld [vmem:[#allocation5 + $0x64] sm:$0xf]
    %v157 = vld [vmem:[#allocation5 + $0x68] sm:$0xf]
    %v158 = vld [vmem:[#allocation5 + $0x6c] sm:$0xf]
    %v159 = vld [vmem:[#allocation5 + $0x70] sm:$0xf]
    %v160 = vld [vmem:[#allocation5 + $0x74] sm:$0xf]
    %v161 = vld [vmem:[#allocation5 + $0x78] sm:$0xf]
    %v162 = vld [vmem:[#allocation5 + $0x7c] sm:$0xf]
    %v179 = vunpack.c.l.b16 %v115
    %v180 = vunpack.c.h.b16 %v115
    %v181 = vunpack.c.l.b16 %v116
    %v182 = vunpack.c.h.b16 %v116
    %v183 = vunpack.c.l.b16 %v117
    %v184 = vunpack.c.h.b16 %v117
    %v185 = vunpack.c.l.b16 %v118
    %v186 = vunpack.c.h.b16 %v118
    %v187 = vunpack.c.l.b16 %v119
    %v188 = vunpack.c.h.b16 %v119
    %v189 = vunpack.c.l.b16 %v120
    %v190 = vunpack.c.h.b16 %v120
    %v191 = vunpack.c.l.b16 %v121
    %v192 = vunpack.c.h.b16 %v121
    %v193 = vunpack.c.l.b16 %v122
    %v194 = vunpack.c.h.b16 %v122
    %v195 = vunpack.c.l.b16 %v123
    %v196 = vunpack.c.h.b16 %v123
    %v197 = vunpack.c.l.b16 %v124
    %v198 = vunpack.c.h.b16 %v124
    %v199 = vunpack.c.l.b16 %v125
    %v200 = vunpack.c.h.b16 %v125
    %v201 = vunpack.c.l.b16 %v126
    %v202 = vunpack.c.h.b16 %v126
    %v203 = vunpack.c.l.b16 %v127
    %v204 = vunpack.c.h.b16 %v127
    %v205 = vunpack.c.l.b16 %v128
    %v206 = vunpack.c.h.b16 %v128
    %v207 = vunpack.c.l.b16 %v129
    %v208 = vunpack.c.h.b16 %v129
    %v209 = vunpack.c.l.b16 %v130
    %v210 = vunpack.c.h.b16 %v130
    %v211 = vpack.c.b16 %v181, %v179
    %v212 = vpack.c.b16 %v182, %v180
    %v213 = vpack.c.b16 %v185, %v183
    %v214 = vpack.c.b16 %v186, %v184
    %v215 = vpack.c.b16 %v189, %v187
    %v216 = vpack.c.b16 %v190, %v188
    %v217 = vpack.c.b16 %v193, %v191
    %v218 = vpack.c.b16 %v194, %v192
    %v219 = vpack.c.b16 %v197, %v195
    %v220 = vpack.c.b16 %v198, %v196
    %v221 = vpack.c.b16 %v201, %v199
    %v222 = vpack.c.b16 %v202, %v200
    %v223 = vpack.c.b16 %v205, %v203
    %v224 = vpack.c.b16 %v206, %v204
    %v225 = vpack.c.b16 %v209, %v207
    %v226 = vpack.c.b16 %v210, %v208
    %v275 = vunpack.c.l.b16 %v131
    %v276 = vunpack.c.l.b16 %v132
    %v277 = vunpack.c.l.b16 %v133
    %v278 = vunpack.c.l.b16 %v134
    %v279 = vunpack.c.l.b16 %v135
    %v280 = vunpack.c.l.b16 %v136
    %v281 = vunpack.c.l.b16 %v137
    %v282 = vunpack.c.l.b16 %v138
    %v283 = vunpack.c.l.b16 %v139
    %v284 = vunpack.c.l.b16 %v140
    %v285 = vunpack.c.l.b16 %v141
    %v286 = vunpack.c.l.b16 %v142
    %v287 = vunpack.c.l.b16 %v143
    %v288 = vunpack.c.l.b16 %v144
    %v289 = vunpack.c.l.b16 %v145
    %v290 = vunpack.c.l.b16 %v146
    %v291 = vunpack.c.l.b16 %v147
    %v292 = vunpack.c.l.b16 %v148
    %v293 = vunpack.c.l.b16 %v149
    %v294 = vunpack.c.l.b16 %v150
    %v295 = vunpack.c.l.b16 %v151
    %v296 = vunpack.c.l.b16 %v152
    %v297 = vunpack.c.l.b16 %v153
    %v298 = vunpack.c.l.b16 %v154
    %v299 = vunpack.c.l.b16 %v155
    %v300 = vunpack.c.l.b16 %v156
    %v301 = vunpack.c.l.b16 %v157
    %v302 = vunpack.c.l.b16 %v158
    %v303 = vunpack.c.l.b16 %v159
    %v304 = vunpack.c.l.b16 %v160
    %v305 = vunpack.c.l.b16 %v161
    %v306 = vunpack.c.l.b16 %v162
    %v307 = vpack.c.b16 %v276, %v275
    %v308 = vpack.c.b16 %v278, %v277
    %v309 = vpack.c.b16 %v280, %v279
    %v310 = vpack.c.b16 %v282, %v281
    %v311 = vpack.c.b16 %v284, %v283
    %v312 = vpack.c.b16 %v286, %v285
    %v313 = vpack.c.b16 %v288, %v287
    %v314 = vpack.c.b16 %v290, %v289
    %v315 = vpack.c.b16 %v292, %v291
    %v316 = vpack.c.b16 %v294, %v293
    %v317 = vpack.c.b16 %v296, %v295
    %v318 = vpack.c.b16 %v298, %v297
    %v319 = vpack.c.b16 %v300, %v299
    %v320 = vpack.c.b16 %v302, %v301
    %v321 = vpack.c.b16 %v304, %v303
    %v322 = vpack.c.b16 %v306, %v305
    %339 = vmatprep.subr.bf16.mxu0 0
    %340 = vmatpush1.bf16.msra.mxu0 %v307
    %341 = vmatprep.subr.bf16.mxu0 0
    %342 = vmatpush1.bf16.msra.mxu0 %v308
    %343 = vmatprep.subr.bf16.mxu0 0
    %344 = vmatpush1.bf16.msra.mxu0 %v309
    %345 = vmatprep.subr.bf16.mxu0 0
    %346 = vmatpush1.bf16.msra.mxu0 %v310
    %347 = vmatprep.subr.bf16.mxu0 0
    %348 = vmatpush1.bf16.msra.mxu0 %v311
    %349 = vmatprep.subr.bf16.mxu0 0
    %350 = vmatpush1.bf16.msra.mxu0 %v312
    %351 = vmatprep.subr.bf16.mxu0 0
    %352 = vmatpush1.bf16.msra.mxu0 %v313
    %353 = vmatprep.subr.bf16.mxu0 0
    %354 = vmatpush1.bf16.msra.mxu0 %v314
    %355 = vmatprep.subr.bf16.mxu0 0
    %356 = vmatpush1.bf16.msra.mxu0 %v315
    %357 = vmatprep.subr.bf16.mxu0 0
    %358 = vmatpush1.bf16.msra.mxu0 %v316
    %359 = vmatprep.subr.bf16.mxu0 0
    %360 = vmatpush1.bf16.msra.mxu0 %v317
    %361 = vmatprep.subr.bf16.mxu0 0
    %362 = vmatpush1.bf16.msra.mxu0 %v318
    %363 = vmatprep.subr.bf16.mxu0 0
    %364 = vmatpush1.bf16.msra.mxu0 %v319
    %365 = vmatprep.subr.bf16.mxu0 0
    %366 = vmatpush1.bf16.msra.mxu0 %v320
    %367 = vmatprep.subr.bf16.mxu0 0
    %368 = vmatpush1.bf16.msra.mxu0 %v321
    %369 = vmatprep.subr.bf16.mxu0 0
    %370 = vmatpush1.bf16.msra.mxu0 %v322
    %371 = vmatprep.mubr.bf16.mxu0 %v212
    %372 = vmatmul.mubr.bf16.gmra.mrb[0].mxu0 %v211
    %v373 = vpop.f32.mrb[0].mxu0
    %v374 = vadd.f32 0.0, %v373
    %v375 = vpop.f32.mrb[0].mxu0
    %v376 = vpop.f32.mrb[0].mxu0
    %v377 = vadd.f32 0.0, %v376
    %v378 = vpop.f32.mrb[0].mxu0
    %379 = vmatprep.mubr.bf16.mxu0 %v214
    %380 = vmatmul.mubr.bf16.gmra.mrb[0].mxu0 %v213
    %v381 = vpop.f32.mrb[0].mxu0
    %v382 = vadd.f32 0.0, %v381
    %v383 = vpop.f32.mrb[0].mxu0
    %v384 = vpop.f32.mrb[0].mxu0
    %v385 = vadd.f32 0.0, %v384
    %v386 = vpop.f32.mrb[0].mxu0
    %387 = vmatprep.mubr.bf16.mxu0 %v216
    %388 = vmatmul.mubr.bf16.gmra.mrb[0].mxu0 %v215
    %v389 = vpop.f32.mrb[0].mxu0
    %v390 = vadd.f32 0.0, %v389
    %v391 = vpop.f32.mrb[0].mxu0
    %v392 = vpop.f32.mrb[0].mxu0
    %v393 = vadd.f32 0.0, %v392
    %v394 = vpop.f32.mrb[0].mxu0
    %395 = vmatprep.mubr.bf16.mxu0 %v218
    %396 = vmatmul.mubr.bf16.gmra.mrb[0].mxu0 %v217
    %v397 = vpop.f32.mrb[0].mxu0
    %v398 = vadd.f32 0.0, %v397
    %v399 = vpop.f32.mrb[0].mxu0
    %v400 = vpop.f32.mrb[0].mxu0
    %v401 = vadd.f32 0.0, %v400
    %v402 = vpop.f32.mrb[0].mxu0
    %403 = vmatprep.mubr.bf16.mxu0 %v220
    %404 = vmatmul.mubr.bf16.gmra.mrb[0].mxu0 %v219
    %v405 = vpop.f32.mrb[0].mxu0
    %v406 = vadd.f32 0.0, %v405
    %v407 = vpop.f32.mrb[0].mxu0
    %v408 = vpop.f32.mrb[0].mxu0
    %v409 = vadd.f32 0.0, %v408
    %v410 = vpop.f32.mrb[0].mxu0
    %411 = vmatprep.mubr.bf16.mxu0 %v222
    %412 = vmatmul.mubr.bf16.gmra.mrb[0].mxu0 %v221
    %v413 = vpop.f32.mrb[0].mxu0
    %v414 = vadd.f32 0.0, %v413
    %v415 = vpop.f32.mrb[0].mxu0
    %v416 = vpop.f32.mrb[0].mxu0
    %v417 = vadd.f32 0.0, %v416
    %v418 = vpop.f32.mrb[0].mxu0
    %419 = vmatprep.mubr.bf16.mxu0 %v224
    %420 = vmatmul.mubr.bf16.gmra.mrb[0].mxu0 %v223
    %v421 = vpop.f32.mrb[0].mxu0
    %v422 = vadd.f32 0.0, %v421
    %v423 = vpop.f32.mrb[0].mxu0
    %v424 = vpop.f32.mrb[0].mxu0
    %v425 = vadd.f32 0.0, %v424
    %v426 = vpop.f32.mrb[0].mxu0
    %427 = vmatprep.mubr.bf16.mxu0 %v226
    %428 = vmatmul.mubr.bf16.gmra.mrb[0].mxu0 %v225
    %v429 = vpop.f32.mrb[0].mxu0
    %v430 = vadd.f32 0.0, %v429
    %v431 = vpop.f32.mrb[0].mxu0
    %v432 = vpop.f32.mrb[0].mxu0
    %v433 = vadd.f32 0.0, %v432
    %v434 = vpop.f32.mrb[0].mxu0
    %435 = vdwg.mxu0
    %v436 = vadd.f32 %v374, %v377
    %v437 = vadd.f32 %v436, %v382
    %v438 = vadd.f32 %v437, %v385
    %v439 = vadd.f32 %v438, %v390
    %v440 = vadd.f32 %v439, %v393
    %v441 = vadd.f32 %v440, %v398
    %v442 = vadd.f32 %v441, %v401
    %v443 = vadd.f32 %v442, %v406
    %v444 = vadd.f32 %v443, %v409
    %v445 = vadd.f32 %v444, %v414
    %v446 = vadd.f32 %v445, %v417
    %v447 = vadd.f32 %v446, %v422
    %v448 = vadd.f32 %v447, %v425
    %v449 = vadd.f32 %v448, %v430
    %v450 = vadd.f32 %v449, %v433
    %v451 = vrot.slane %v450, 4
    %v452 = vadd.f32 %v450, %v451
    %v453 = vrot.slane %v452, 2
    %v454 = vadd.f32 %v452, %v453
    %v455 = vrot.slane %v454, 1
    %v456 = vadd.f32 %v454, %v455
    %v457 = vmul.f32 %v374, %v374
    %v458 = vmul.f32 %v377, %v377
    %v459 = vmul.f32 %v382, %v382
    %v460 = vmul.f32 %v385, %v385
    %v461 = vmul.f32 %v390, %v390
    %v462 = vmul.f32 %v393, %v393
    %v463 = vmul.f32 %v398, %v398
    %v464 = vmul.f32 %v401, %v401
    %v465 = vmul.f32 %v406, %v406
    %v466 = vmul.f32 %v409, %v409
    %v467 = vmul.f32 %v414, %v414
    %v468 = vmul.f32 %v417, %v417
    %v469 = vmul.f32 %v422, %v422
    %v470 = vmul.f32 %v425, %v425
    %v471 = vmul.f32 %v430, %v430
    %v472 = vmul.f32 %v433, %v433
    %v473 = vadd.f32 %v457, %v458
    %v474 = vadd.f32 %v473, %v459
    %v475 = vadd.f32 %v474, %v460
    %v476 = vadd.f32 %v475, %v461
    %v477 = vadd.f32 %v476, %v462
    %v478 = vadd.f32 %v477, %v463
    %v479 = vadd.f32 %v478, %v464
    %v480 = vadd.f32 %v479, %v465
    %v481 = vadd.f32 %v480, %v466
    %v482 = vadd.f32 %v481, %v467
    %v483 = vadd.f32 %v482, %v468
    %v484 = vadd.f32 %v483, %v469
    %v485 = vadd.f32 %v484, %v470
    %v486 = vadd.f32 %v485, %v471
    %v487 = vadd.f32 %v486, %v472
    %v488 = vrot.slane %v487, 4
    %v489 = vadd.f32 %v487, %v488
    %v490 = vrot.slane %v489, 2
    %v491 = vadd.f32 %v489, %v490
    %v492 = vrot.slane %v491, 1
    %v493 = vadd.f32 %v491, %v492
    %v494 = vmul.f32 %v456, 0.0078125
    %v495 = vmul.f32 %v493, 0.0078125
    %v496 = vmul.f32 %v494, %v494
    %v497 = vsub.f32 %v495, %v496
    %v498 = vmax.f32 %v497, 0.0
    %v499 = vadd.f32 %v498, 1e-05
    %v500 = vrsqrt.pop %v499
    %v501 = vmul.f32 %v60, %v500
    %v502 = vmul.f32 %v494, %v501
    %v503 = vsub.f32 %v61, %v502
    %v505 = vlaneseq
    %v506 = vshrl.u32 %v505, 7
    %v507 = vsub.s32 0, %v506
    %v508 = vrot.slane %v501, %v507
    %v510 = vmul.f32 %v374, %v508
    %v511 = vmul.f32 %v377, %v508
    %v512 = vmul.f32 %v382, %v508
    %v513 = vmul.f32 %v385, %v508
    %v514 = vmul.f32 %v390, %v508
    %v515 = vmul.f32 %v393, %v508
    %v516 = vmul.f32 %v398, %v508
    %v517 = vmul.f32 %v401, %v508
    %v518 = vmul.f32 %v406, %v508
    %v519 = vmul.f32 %v409, %v508
    %v520 = vmul.f32 %v414, %v508
    %v521 = vmul.f32 %v417, %v508
    %v522 = vmul.f32 %v422, %v508
    %v523 = vmul.f32 %v425, %v508
    %v524 = vmul.f32 %v430, %v508
    %v525 = vmul.f32 %v433, %v508
    %v527 = vlaneseq
    %v528 = vshrl.u32 %v527, 7
    %v529 = vsub.s32 0, %v528
    %v530 = vrot.slane %v503, %v529
    %v532 = vadd.f32 %v510, %v530
    %v533 = vadd.f32 %v511, %v530
    %v534 = vadd.f32 %v512, %v530
    %v535 = vadd.f32 %v513, %v530
    %v536 = vadd.f32 %v514, %v530
    %v537 = vadd.f32 %v515, %v530
    %v538 = vadd.f32 %v516, %v530
    %v539 = vadd.f32 %v517, %v530
    %v540 = vadd.f32 %v518, %v530
    %v541 = vadd.f32 %v519, %v530
    %v542 = vadd.f32 %v520, %v530
    %v543 = vadd.f32 %v521, %v530
    %v544 = vadd.f32 %v522, %v530
    %v545 = vadd.f32 %v523, %v530
    %v546 = vadd.f32 %v524, %v530
    %v547 = vadd.f32 %v525, %v530
    %v548 = vmax.f32 %v532, 0.0
    %v549 = vmax.f32 %v533, 0.0
    %v550 = vmax.f32 %v534, 0.0
    %v551 = vmax.f32 %v535, 0.0
    %v552 = vmax.f32 %v536, 0.0
    %v553 = vmax.f32 %v537, 0.0
    %v554 = vmax.f32 %v538, 0.0
    %v555 = vmax.f32 %v539, 0.0
    %v556 = vmax.f32 %v540, 0.0
    %v557 = vmax.f32 %v541, 0.0
    %v558 = vmax.f32 %v542, 0.0
    %v559 = vmax.f32 %v543, 0.0
    %v560 = vmax.f32 %v544, 0.0
    %v561 = vmax.f32 %v545, 0.0
    %v562 = vmax.f32 %v546, 0.0
    %v563 = vmax.f32 %v547, 0.0
    %v564 = vpack.c.bf16 %v549, %v548
    %v565 = vpack.c.bf16 %v551, %v550
    %v566 = vpack.c.bf16 %v553, %v552
    %v567 = vpack.c.bf16 %v555, %v554
    %v568 = vpack.c.bf16 %v557, %v556
    %v569 = vpack.c.bf16 %v559, %v558
    %v570 = vpack.c.bf16 %v561, %v560
    %v571 = vpack.c.bf16 %v563, %v562
    %v588 = vunpack.c.l.b16 %v67
    %v589 = vunpack.c.l.b16 %v68
    %v590 = vunpack.c.l.b16 %v69
    %v591 = vunpack.c.l.b16 %v70
    %v592 = vunpack.c.l.b16 %v71
    %v593 = vunpack.c.l.b16 %v72
    %v594 = vunpack.c.l.b16 %v73
    %v595 = vunpack.c.l.b16 %v74
    %v596 = vunpack.c.l.b16 %v75
    %v597 = vunpack.c.l.b16 %v76
    %v598 = vunpack.c.l.b16 %v77
    %v599 = vunpack.c.l.b16 %v78
    %v600 = vunpack.c.l.b16 %v79
    %v601 = vunpack.c.l.b16 %v80
    %v602 = vunpack.c.l.b16 %v81
    %v603 = vunpack.c.l.b16 %v82
    %v604 = vpack.c.b16 %v589, %v588
    %v605 = vpack.c.b16 %v591, %v590
    %v606 = vpack.c.b16 %v593, %v592
    %v607 = vpack.c.b16 %v595, %v594
    %v608 = vpack.c.b16 %v597, %v596
    %v609 = vpack.c.b16 %v599, %v598
    %v610 = vpack.c.b16 %v601, %v600
    %v611 = vpack.c.b16 %v603, %v602
    %620 = vmatprep.subr.bf16.mxu0 0
    %621 = vmatpush1.bf16.msra.mxu0 %v604
    %622 = vmatprep.subr.bf16.mxu0 0
    %623 = vmatpush1.bf16.msra.mxu0 %v605
    %624 = vmatprep.subr.bf16.mxu0 0
    %625 = vmatpush1.bf16.msra.mxu0 %v606
    %626 = vmatprep.subr.bf16.mxu0 0
    %627 = vmatpush1.bf16.msra.mxu0 %v607
    %628 = vmatprep.subr.bf16.mxu0 0
    %629 = vmatpush1.bf16.msra.mxu0 %v608
    %630 = vmatprep.subr.bf16.mxu0 0
    %631 = vmatpush1.bf16.msra.mxu0 %v609
    %632 = vmatprep.subr.bf16.mxu0 0
    %633 = vmatpush1.bf16.msra.mxu0 %v610
    %634 = vmatprep.subr.bf16.mxu0 0
    %635 = vmatpush1.bf16.msra.mxu0 %v611
    %636 = vmatprep.subr.bf16.mxu0 0
    %637 = vmatpush1.bf16.msra.mxu0 0
    %638 = vmatprep.subr.bf16.mxu0 0
    %639 = vmatpush1.bf16.msra.mxu0 0
    %640 = vmatprep.subr.bf16.mxu0 0
    %641 = vmatpush1.bf16.msra.mxu0 0
    %642 = vmatprep.subr.bf16.mxu0 0
    %643 = vmatpush1.bf16.msra.mxu0 0
    %644 = vmatprep.subr.bf16.mxu0 0
    %645 = vmatpush1.bf16.msra.mxu0 0
    %646 = vmatprep.subr.bf16.mxu0 0
    %647 = vmatpush1.bf16.msra.mxu0 0
    %648 = vmatprep.subr.bf16.mxu0 0
    %649 = vmatpush1.bf16.msra.mxu0 0
    %650 = vmatprep.subr.bf16.mxu0 0
    %651 = vmatpush1.bf16.msra.mxu0 0
    %652 = vmatprep.mubr.bf16.mxu0 0
    %653 = vmatmul.mubr.bf16.gmra.mrb[0].mxu0 %v564
    %v654 = vpop.f32.mrb[0].mxu0
    %v655 = vadd.f32 0.0, %v654
    %v656 = vpop.f32.mrb[0].mxu0
    %v657 = vpop.f32.mrb[0].mxu0
    %v658 = vadd.f32 0.0, %v657
    %v659 = vpop.f32.mrb[0].mxu0
    %660 = vmatprep.mubr.bf16.mxu0 0
    %661 = vmatmul.mubr.bf16.gmra.mrb[0].mxu0 %v565
    %v662 = vpop.f32.mrb[0].mxu0
    %v663 = vadd.f32 0.0, %v662
    %v664 = vpop.f32.mrb[0].mxu0
    %v665 = vpop.f32.mrb[0].mxu0
    %v666 = vadd.f32 0.0, %v665
    %v667 = vpop.f32.mrb[0].mxu0
    %668 = vmatprep.mubr.bf16.mxu0 0
    %669 = vmatmul.mubr.bf16.gmra.mrb[0].mxu0 %v566
    %v670 = vpop.f32.mrb[0].mxu0
    %v671 = vadd.f32 0.0, %v670
    %v672 = vpop.f32.mrb[0].mxu0
    %v673 = vpop.f32.mrb[0].mxu0
    %v674 = vadd.f32 0.0, %v673
    %v675 = vpop.f32.mrb[0].mxu0
    %676 = vmatprep.mubr.bf16.mxu0 0
    %677 = vmatmul.mubr.bf16.gmra.mrb[0].mxu0 %v567
    %v678 = vpop.f32.mrb[0].mxu0
    %v679 = vadd.f32 0.0, %v678
    %v680 = vpop.f32.mrb[0].mxu0
    %v681 = vpop.f32.mrb[0].mxu0
    %v682 = vadd.f32 0.0, %v681
    %v683 = vpop.f32.mrb[0].mxu0
    %684 = vmatprep.mubr.bf16.mxu0 0
    %685 = vmatmul.mubr.bf16.gmra.mrb[0].mxu0 %v568
    %v686 = vpop.f32.mrb[0].mxu0
    %v687 = vadd.f32 0.0, %v686
    %v688 = vpop.f32.mrb[0].mxu0
    %v689 = vpop.f32.mrb[0].mxu0
    %v690 = vadd.f32 0.0, %v689
    %v691 = vpop.f32.mrb[0].mxu0
    %692 = vmatprep.mubr.bf16.mxu0 0
    %693 = vmatmul.mubr.bf16.gmra.mrb[0].mxu0 %v569
    %v694 = vpop.f32.mrb[0].mxu0
    %v695 = vadd.f32 0.0, %v694
    %v696 = vpop.f32.mrb[0].mxu0
    %v697 = vpop.f32.mrb[0].mxu0
    %v698 = vadd.f32 0.0, %v697
    %v699 = vpop.f32.mrb[0].mxu0
    %700 = vmatprep.mubr.bf16.mxu0 0
    %701 = vmatmul.mubr.bf16.gmra.mrb[0].mxu0 %v570
    %v702 = vpop.f32.mrb[0].mxu0
    %v703 = vadd.f32 0.0, %v702
    %v704 = vpop.f32.mrb[0].mxu0
    %v705 = vpop.f32.mrb[0].mxu0
    %v706 = vadd.f32 0.0, %v705
    %v707 = vpop.f32.mrb[0].mxu0
    %708 = vmatprep.mubr.bf16.mxu0 0
    %709 = vmatmul.mubr.bf16.gmra.mrb[0].mxu0 %v571
    %v710 = vpop.f32.mrb[0].mxu0
    %v711 = vadd.f32 0.0, %v710
    %v712 = vpop.f32.mrb[0].mxu0
    %v713 = vpop.f32.mrb[0].mxu0
    %v714 = vadd.f32 0.0, %v713
    %v715 = vpop.f32.mrb[0].mxu0
    %716 = vdwg.mxu0
    %v717 = vadd.f32 %v655, %v658
    %v718 = vadd.f32 %v717, %v663
    %v719 = vadd.f32 %v718, %v666
    %v720 = vadd.f32 %v719, %v671
    %v721 = vadd.f32 %v720, %v674
    %v722 = vadd.f32 %v721, %v679
    %v723 = vadd.f32 %v722, %v682
    %v724 = vadd.f32 %v723, %v687
    %v725 = vadd.f32 %v724, %v690
    %v726 = vadd.f32 %v725, %v695
    %v727 = vadd.f32 %v726, %v698
    %v728 = vadd.f32 %v727, %v703
    %v729 = vadd.f32 %v728, %v706
    %v730 = vadd.f32 %v729, %v711
    %v731 = vadd.f32 %v730, %v714
    %v732 = vrot.slane %v731, 4
    %v733 = vadd.f32 %v731, %v732
    %v734 = vrot.slane %v733, 2
    %v735 = vadd.f32 %v733, %v734
    %v736 = vrot.slane %v735, 1
    %v737 = vadd.f32 %v735, %v736
    %v738 = vmul.f32 %v655, %v655
    %v739 = vmul.f32 %v658, %v658
    %v740 = vmul.f32 %v663, %v663
    %v741 = vmul.f32 %v666, %v666
    %v742 = vmul.f32 %v671, %v671
    %v743 = vmul.f32 %v674, %v674
    %v744 = vmul.f32 %v679, %v679
    %v745 = vmul.f32 %v682, %v682
    %v746 = vmul.f32 %v687, %v687
    %v747 = vmul.f32 %v690, %v690
    %v748 = vmul.f32 %v695, %v695
    %v749 = vmul.f32 %v698, %v698
    %v750 = vmul.f32 %v703, %v703
    %v751 = vmul.f32 %v706, %v706
    %v752 = vmul.f32 %v711, %v711
    %v753 = vmul.f32 %v714, %v714
    %v754 = vadd.f32 %v738, %v739
    %v755 = vadd.f32 %v754, %v740
    %v756 = vadd.f32 %v755, %v741
    %v757 = vadd.f32 %v756, %v742
    %v758 = vadd.f32 %v757, %v743
    %v759 = vadd.f32 %v758, %v744
    %v760 = vadd.f32 %v759, %v745
    %v761 = vadd.f32 %v760, %v746
    %v762 = vadd.f32 %v761, %v747
    %v763 = vadd.f32 %v762, %v748
    %v764 = vadd.f32 %v763, %v749
    %v765 = vadd.f32 %v764, %v750
    %v766 = vadd.f32 %v765, %v751
    %v767 = vadd.f32 %v766, %v752
    %v768 = vadd.f32 %v767, %v753
    %v769 = vrot.slane %v768, 4
    %v770 = vadd.f32 %v768, %v769
    %v771 = vrot.slane %v770, 2
    %v772 = vadd.f32 %v770, %v771
    %v773 = vrot.slane %v772, 1
    %v774 = vadd.f32 %v772, %v773
    %v775 = vmul.f32 %v737, 0.0078125
    %v776 = vmul.f32 %v774, 0.0078125
    %v777 = vmul.f32 %v775, %v775
    %v778 = vsub.f32 %v776, %v777
    %v779 = vmax.f32 %v778, 0.0
    %v780 = vadd.f32 %v779, 1e-05
    %v781 = vrsqrt.pop %v780
    %v782 = vmul.f32 %v62, %v781
    %v783 = vmul.f32 %v775, %v782
    %v784 = vsub.f32 %v63, %v783
    %v786 = vlaneseq
    %v787 = vshrl.u32 %v786, 7
    %v788 = vsub.s32 0, %v787
    %v789 = vrot.slane %v782, %v788
    %v791 = vmul.f32 %v655, %v789
    %v792 = vmul.f32 %v658, %v789
    %v793 = vmul.f32 %v663, %v789
    %v794 = vmul.f32 %v666, %v789
    %v795 = vmul.f32 %v671, %v789
    %v796 = vmul.f32 %v674, %v789
    %v797 = vmul.f32 %v679, %v789
    %v798 = vmul.f32 %v682, %v789
    %v799 = vmul.f32 %v687, %v789
    %v800 = vmul.f32 %v690, %v789
    %v801 = vmul.f32 %v695, %v789
    %v802 = vmul.f32 %v698, %v789
    %v803 = vmul.f32 %v703, %v789
    %v804 = vmul.f32 %v706, %v789
    %v805 = vmul.f32 %v711, %v789
    %v806 = vmul.f32 %v714, %v789
    %v808 = vlaneseq
    %v809 = vshrl.u32 %v808, 7
    %v810 = vsub.s32 0, %v809
    %v811 = vrot.slane %v784, %v810
    %v813 = vadd.f32 %v791, %v811
    %v814 = vadd.f32 %v792, %v811
    %v815 = vadd.f32 %v793, %v811
    %v816 = vadd.f32 %v794, %v811
    %v817 = vadd.f32 %v795, %v811
    %v818 = vadd.f32 %v796, %v811
    %v819 = vadd.f32 %v797, %v811
    %v820 = vadd.f32 %v798, %v811
    %v821 = vadd.f32 %v799, %v811
    %v822 = vadd.f32 %v800, %v811
    %v823 = vadd.f32 %v801, %v811
    %v824 = vadd.f32 %v802, %v811
    %v825 = vadd.f32 %v803, %v811
    %v826 = vadd.f32 %v804, %v811
    %v827 = vadd.f32 %v805, %v811
    %v828 = vadd.f32 %v806, %v811
    %v829 = vmax.f32 %v813, 0.0
    %v830 = vmax.f32 %v814, 0.0
    %v831 = vmax.f32 %v815, 0.0
    %v832 = vmax.f32 %v816, 0.0
    %v833 = vmax.f32 %v817, 0.0
    %v834 = vmax.f32 %v818, 0.0
    %v835 = vmax.f32 %v819, 0.0
    %v836 = vmax.f32 %v820, 0.0
    %v837 = vmax.f32 %v821, 0.0
    %v838 = vmax.f32 %v822, 0.0
    %v839 = vmax.f32 %v823, 0.0
    %v840 = vmax.f32 %v824, 0.0
    %v841 = vmax.f32 %v825, 0.0
    %v842 = vmax.f32 %v826, 0.0
    %v843 = vmax.f32 %v827, 0.0
    %v844 = vmax.f32 %v828, 0.0
    %v845 = vpack.c.bf16 %v830, %v829
    %v846 = vpack.c.bf16 %v832, %v831
    %v847 = vpack.c.bf16 %v834, %v833
    %v848 = vpack.c.bf16 %v836, %v835
    %v849 = vpack.c.bf16 %v838, %v837
    %v850 = vpack.c.bf16 %v840, %v839
    %v851 = vpack.c.bf16 %v842, %v841
    %v852 = vpack.c.bf16 %v844, %v843
    %v869 = vunpack.c.l.b16 %v83
    %v870 = vunpack.c.l.b16 %v84
    %v871 = vunpack.c.l.b16 %v85
    %v872 = vunpack.c.l.b16 %v86
    %v873 = vunpack.c.l.b16 %v87
    %v874 = vunpack.c.l.b16 %v88
    %v875 = vunpack.c.l.b16 %v89
    %v876 = vunpack.c.l.b16 %v90
    %v877 = vunpack.c.l.b16 %v91
    %v878 = vunpack.c.l.b16 %v92
    %v879 = vunpack.c.l.b16 %v93
    %v880 = vunpack.c.l.b16 %v94
    %v881 = vunpack.c.l.b16 %v95
    %v882 = vunpack.c.l.b16 %v96
    %v883 = vunpack.c.l.b16 %v97
    %v884 = vunpack.c.l.b16 %v98
    %v885 = vpack.c.b16 %v870, %v869
    %v886 = vpack.c.b16 %v872, %v871
    %v887 = vpack.c.b16 %v874, %v873
    %v888 = vpack.c.b16 %v876, %v875
    %v889 = vpack.c.b16 %v878, %v877
    %v890 = vpack.c.b16 %v880, %v879
    %v891 = vpack.c.b16 %v882, %v881
    %v892 = vpack.c.b16 %v884, %v883
    %901 = vmatprep.subr.bf16.mxu0 0
    %902 = vmatpush1.bf16.msra.mxu0 %v885
    %903 = vmatprep.subr.bf16.mxu0 0
    %904 = vmatpush1.bf16.msra.mxu0 %v886
    %905 = vmatprep.subr.bf16.mxu0 0
    %906 = vmatpush1.bf16.msra.mxu0 %v887
    %907 = vmatprep.subr.bf16.mxu0 0
    %908 = vmatpush1.bf16.msra.mxu0 %v888
    %909 = vmatprep.subr.bf16.mxu0 0
    %910 = vmatpush1.bf16.msra.mxu0 %v889
    %911 = vmatprep.subr.bf16.mxu0 0
    %912 = vmatpush1.bf16.msra.mxu0 %v890
    %913 = vmatprep.subr.bf16.mxu0 0
    %914 = vmatpush1.bf16.msra.mxu0 %v891
    %915 = vmatprep.subr.bf16.mxu0 0
    %916 = vmatpush1.bf16.msra.mxu0 %v892
    %917 = vmatprep.subr.bf16.mxu0 0
    %918 = vmatpush1.bf16.msra.mxu0 0
    %919 = vmatprep.subr.bf16.mxu0 0
    %920 = vmatpush1.bf16.msra.mxu0 0
    %921 = vmatprep.subr.bf16.mxu0 0
    %922 = vmatpush1.bf16.msra.mxu0 0
    %923 = vmatprep.subr.bf16.mxu0 0
    %924 = vmatpush1.bf16.msra.mxu0 0
    %925 = vmatprep.subr.bf16.mxu0 0
    %926 = vmatpush1.bf16.msra.mxu0 0
    %927 = vmatprep.subr.bf16.mxu0 0
    %928 = vmatpush1.bf16.msra.mxu0 0
    %929 = vmatprep.subr.bf16.mxu0 0
    %930 = vmatpush1.bf16.msra.mxu0 0
    %931 = vmatprep.subr.bf16.mxu0 0
    %932 = vmatpush1.bf16.msra.mxu0 0
    %933 = vmatprep.mubr.bf16.mxu0 0
    %934 = vmatmul.mubr.bf16.gmra.mrb[0].mxu0 %v845
    %v935 = vpop.f32.mrb[0].mxu0
    %v936 = vadd.f32 0.0, %v935
    %v937 = vpop.f32.mrb[0].mxu0
    %v938 = vpop.f32.mrb[0].mxu0
    %v939 = vadd.f32 0.0, %v938
    %v940 = vpop.f32.mrb[0].mxu0
    %941 = vmatprep.mubr.bf16.mxu0 0
    %942 = vmatmul.mubr.bf16.gmra.mrb[0].mxu0 %v846
    %v943 = vpop.f32.mrb[0].mxu0
    %v944 = vadd.f32 0.0, %v943
    %v945 = vpop.f32.mrb[0].mxu0
    %v946 = vpop.f32.mrb[0].mxu0
    %v947 = vadd.f32 0.0, %v946
    %v948 = vpop.f32.mrb[0].mxu0
    %949 = vmatprep.mubr.bf16.mxu0 0
    %950 = vmatmul.mubr.bf16.gmra.mrb[0].mxu0 %v847
    %v951 = vpop.f32.mrb[0].mxu0
    %v952 = vadd.f32 0.0, %v951
    %v953 = vpop.f32.mrb[0].mxu0
    %v954 = vpop.f32.mrb[0].mxu0
    %v955 = vadd.f32 0.0, %v954
    %v956 = vpop.f32.mrb[0].mxu0
    %957 = vmatprep.mubr.bf16.mxu0 0
    %958 = vmatmul.mubr.bf16.gmra.mrb[0].mxu0 %v848
    %v959 = vpop.f32.mrb[0].mxu0
    %v960 = vadd.f32 0.0, %v959
    %v961 = vpop.f32.mrb[0].mxu0
    %v962 = vpop.f32.mrb[0].mxu0
    %v963 = vadd.f32 0.0, %v962
    %v964 = vpop.f32.mrb[0].mxu0
    %965 = vmatprep.mubr.bf16.mxu0 0
    %966 = vmatmul.mubr.bf16.gmra.mrb[0].mxu0 %v849
    %v967 = vpop.f32.mrb[0].mxu0
    %v968 = vadd.f32 0.0, %v967
    %v969 = vpop.f32.mrb[0].mxu0
    %v970 = vpop.f32.mrb[0].mxu0
    %v971 = vadd.f32 0.0, %v970
    %v972 = vpop.f32.mrb[0].mxu0
    %973 = vmatprep.mubr.bf16.mxu0 0
    %974 = vmatmul.mubr.bf16.gmra.mrb[0].mxu0 %v850
    %v975 = vpop.f32.mrb[0].mxu0
    %v976 = vadd.f32 0.0, %v975
    %v977 = vpop.f32.mrb[0].mxu0
    %v978 = vpop.f32.mrb[0].mxu0
    %v979 = vadd.f32 0.0, %v978
    %v980 = vpop.f32.mrb[0].mxu0
    %981 = vmatprep.mubr.bf16.mxu0 0
    %982 = vmatmul.mubr.bf16.gmra.mrb[0].mxu0 %v851
    %v983 = vpop.f32.mrb[0].mxu0
    %v984 = vadd.f32 0.0, %v983
    %v985 = vpop.f32.mrb[0].mxu0
    %v986 = vpop.f32.mrb[0].mxu0
    %v987 = vadd.f32 0.0, %v986
    %v988 = vpop.f32.mrb[0].mxu0
    %989 = vmatprep.mubr.bf16.mxu0 0
    %990 = vmatmul.mubr.bf16.gmra.mrb[0].mxu0 %v852
    %v991 = vpop.f32.mrb[0].mxu0
    %v992 = vadd.f32 0.0, %v991
    %v993 = vpop.f32.mrb[0].mxu0
    %v994 = vpop.f32.mrb[0].mxu0
    %v995 = vadd.f32 0.0, %v994
    %v996 = vpop.f32.mrb[0].mxu0
    %997 = vdwg.mxu0
    %v998 = vadd.f32 %v936, %v939
    %v999 = vadd.f32 %v998, %v944
    %v1000 = vadd.f32 %v999, %v947
    %v1001 = vadd.f32 %v1000, %v952
    %v1002 = vadd.f32 %v1001, %v955
    %v1003 = vadd.f32 %v1002, %v960
    %v1004 = vadd.f32 %v1003, %v963
    %v1005 = vadd.f32 %v1004, %v968
    %v1006 = vadd.f32 %v1005, %v971
    %v1007 = vadd.f32 %v1006, %v976
    %v1008 = vadd.f32 %v1007, %v979
    %v1009 = vadd.f32 %v1008, %v984
    %v1010 = vadd.f32 %v1009, %v987
    %v1011 = vadd.f32 %v1010, %v992
    %v1012 = vadd.f32 %v1011, %v995
    %v1013 = vrot.slane %v1012, 4
    %v1014 = vadd.f32 %v1012, %v1013
    %v1015 = vrot.slane %v1014, 2
    %v1016 = vadd.f32 %v1014, %v1015
    %v1017 = vrot.slane %v1016, 1
    %v1018 = vadd.f32 %v1016, %v1017
    %v1019 = vmul.f32 %v936, %v936
    %v1020 = vmul.f32 %v939, %v939
    %v1021 = vmul.f32 %v944, %v944
    %v1022 = vmul.f32 %v947, %v947
    %v1023 = vmul.f32 %v952, %v952
    %v1024 = vmul.f32 %v955, %v955
    %v1025 = vmul.f32 %v960, %v960
    %v1026 = vmul.f32 %v963, %v963
    %v1027 = vmul.f32 %v968, %v968
    %v1028 = vmul.f32 %v971, %v971
    %v1029 = vmul.f32 %v976, %v976
    %v1030 = vmul.f32 %v979, %v979
    %v1031 = vmul.f32 %v984, %v984
    %v1032 = vmul.f32 %v987, %v987
    %v1033 = vmul.f32 %v992, %v992
    %v1034 = vmul.f32 %v995, %v995
    %v1035 = vadd.f32 %v1019, %v1020
    %v1036 = vadd.f32 %v1035, %v1021
    %v1037 = vadd.f32 %v1036, %v1022
    %v1038 = vadd.f32 %v1037, %v1023
    %v1039 = vadd.f32 %v1038, %v1024
    %v1040 = vadd.f32 %v1039, %v1025
    %v1041 = vadd.f32 %v1040, %v1026
    %v1042 = vadd.f32 %v1041, %v1027
    %v1043 = vadd.f32 %v1042, %v1028
    %v1044 = vadd.f32 %v1043, %v1029
    %v1045 = vadd.f32 %v1044, %v1030
    %v1046 = vadd.f32 %v1045, %v1031
    %v1047 = vadd.f32 %v1046, %v1032
    %v1048 = vadd.f32 %v1047, %v1033
    %v1049 = vadd.f32 %v1048, %v1034
    %v1050 = vrot.slane %v1049, 4
    %v1051 = vadd.f32 %v1049, %v1050
    %v1052 = vrot.slane %v1051, 2
    %v1053 = vadd.f32 %v1051, %v1052
    %v1054 = vrot.slane %v1053, 1
    %v1055 = vadd.f32 %v1053, %v1054
    %v1056 = vmul.f32 %v1018, 0.0078125
    %v1057 = vmul.f32 %v1055, 0.0078125
    %v1058 = vmul.f32 %v1056, %v1056
    %v1059 = vsub.f32 %v1057, %v1058
    %v1060 = vmax.f32 %v1059, 0.0
    %v1061 = vadd.f32 %v1060, 1e-05
    %v1062 = vrsqrt.pop %v1061
    %v1063 = vmul.f32 %v64, %v1062
    %v1064 = vmul.f32 %v1056, %v1063
    %v1065 = vsub.f32 %v65, %v1064
    %v1067 = vlaneseq
    %v1068 = vshrl.u32 %v1067, 7
    %v1069 = vsub.s32 0, %v1068
    %v1070 = vrot.slane %v1063, %v1069
    %v1072 = vmul.f32 %v936, %v1070
    %v1073 = vmul.f32 %v939, %v1070
    %v1074 = vmul.f32 %v944, %v1070
    %v1075 = vmul.f32 %v947, %v1070
    %v1076 = vmul.f32 %v952, %v1070
    %v1077 = vmul.f32 %v955, %v1070
    %v1078 = vmul.f32 %v960, %v1070
    %v1079 = vmul.f32 %v963, %v1070
    %v1080 = vmul.f32 %v968, %v1070
    %v1081 = vmul.f32 %v971, %v1070
    %v1082 = vmul.f32 %v976, %v1070
    %v1083 = vmul.f32 %v979, %v1070
    %v1084 = vmul.f32 %v984, %v1070
    %v1085 = vmul.f32 %v987, %v1070
    %v1086 = vmul.f32 %v992, %v1070
    %v1087 = vmul.f32 %v995, %v1070
    %v1089 = vlaneseq
    %v1090 = vshrl.u32 %v1089, 7
    %v1091 = vsub.s32 0, %v1090
    %v1092 = vrot.slane %v1065, %v1091
    %v1094 = vadd.f32 %v1072, %v1092
    %v1095 = vadd.f32 %v1073, %v1092
    %v1096 = vadd.f32 %v1074, %v1092
    %v1097 = vadd.f32 %v1075, %v1092
    %v1098 = vadd.f32 %v1076, %v1092
    %v1099 = vadd.f32 %v1077, %v1092
    %v1100 = vadd.f32 %v1078, %v1092
    %v1101 = vadd.f32 %v1079, %v1092
    %v1102 = vadd.f32 %v1080, %v1092
    %v1103 = vadd.f32 %v1081, %v1092
    %v1104 = vadd.f32 %v1082, %v1092
    %v1105 = vadd.f32 %v1083, %v1092
    %v1106 = vadd.f32 %v1084, %v1092
    %v1107 = vadd.f32 %v1085, %v1092
    %v1108 = vadd.f32 %v1086, %v1092
    %v1109 = vadd.f32 %v1087, %v1092
    %v1110 = vmax.f32 %v1094, 0.0
    %v1111 = vmax.f32 %v1095, 0.0
    %v1112 = vmax.f32 %v1096, 0.0
    %v1113 = vmax.f32 %v1097, 0.0
    %v1114 = vmax.f32 %v1098, 0.0
    %v1115 = vmax.f32 %v1099, 0.0
    %v1116 = vmax.f32 %v1100, 0.0
    %v1117 = vmax.f32 %v1101, 0.0
    %v1118 = vmax.f32 %v1102, 0.0
    %v1119 = vmax.f32 %v1103, 0.0
    %v1120 = vmax.f32 %v1104, 0.0
    %v1121 = vmax.f32 %v1105, 0.0
    %v1122 = vmax.f32 %v1106, 0.0
    %v1123 = vmax.f32 %v1107, 0.0
    %v1124 = vmax.f32 %v1108, 0.0
    %v1125 = vmax.f32 %v1109, 0.0
    %v1126 = vpack.c.bf16 %v1111, %v1110
    %v1127 = vpack.c.bf16 %v1113, %v1112
    %v1128 = vpack.c.bf16 %v1115, %v1114
    %v1129 = vpack.c.bf16 %v1117, %v1116
    %v1130 = vpack.c.bf16 %v1119, %v1118
    %v1131 = vpack.c.bf16 %v1121, %v1120
    %v1132 = vpack.c.bf16 %v1123, %v1122
    %v1133 = vpack.c.bf16 %v1125, %v1124
    %v1135 = vlaneseq
    %v1136 = vshrl.u32 %v1135, 7
    %v1137 = vsub.s32 0, %v1136
    %v1138 = vrot.slane %v66, %v1137
    %v1156 = vunpack.c.l.b16 %v99
    %v1157 = vunpack.c.l.b16 %v100
    %v1158 = vunpack.c.l.b16 %v101
    %v1159 = vunpack.c.l.b16 %v102
    %v1160 = vunpack.c.l.b16 %v103
    %v1161 = vunpack.c.l.b16 %v104
    %v1162 = vunpack.c.l.b16 %v105
    %v1163 = vunpack.c.l.b16 %v106
    %v1164 = vunpack.c.l.b16 %v107
    %v1165 = vunpack.c.l.b16 %v108
    %v1166 = vunpack.c.l.b16 %v109
    %v1167 = vunpack.c.l.b16 %v110
    %v1168 = vunpack.c.l.b16 %v111
    %v1169 = vunpack.c.l.b16 %v112
    %v1170 = vunpack.c.l.b16 %v113
    %v1171 = vunpack.c.l.b16 %v114
    %v1172 = vpack.c.b16 %v1157, %v1156
    %v1173 = vpack.c.b16 %v1159, %v1158
    %v1174 = vpack.c.b16 %v1161, %v1160
    %v1175 = vpack.c.b16 %v1163, %v1162
    %v1176 = vpack.c.b16 %v1165, %v1164
    %v1177 = vpack.c.b16 %v1167, %v1166
    %v1178 = vpack.c.b16 %v1169, %v1168
    %v1179 = vpack.c.b16 %v1171, %v1170
    %1188 = vmatprep.subr.bf16.mxu0 0
    %1189 = vmatpush1.bf16.msra.mxu0 %v1172
    %1190 = vmatprep.subr.bf16.mxu0 0
    %1191 = vmatpush1.bf16.msra.mxu0 %v1173
    %1192 = vmatprep.subr.bf16.mxu0 0
    %1193 = vmatpush1.bf16.msra.mxu0 %v1174
    %1194 = vmatprep.subr.bf16.mxu0 0
    %1195 = vmatpush1.bf16.msra.mxu0 %v1175
    %1196 = vmatprep.subr.bf16.mxu0 0
    %1197 = vmatpush1.bf16.msra.mxu0 %v1176
    %1198 = vmatprep.subr.bf16.mxu0 0
    %1199 = vmatpush1.bf16.msra.mxu0 %v1177
    %1200 = vmatprep.subr.bf16.mxu0 0
    %1201 = vmatpush1.bf16.msra.mxu0 %v1178
    %1202 = vmatprep.subr.bf16.mxu0 0
    %1203 = vmatpush1.bf16.msra.mxu0 %v1179
    %1204 = vmatprep.subr.bf16.mxu0 0
    %1205 = vmatpush1.bf16.msra.mxu0 0
    %1206 = vmatprep.subr.bf16.mxu0 0
    %1207 = vmatpush1.bf16.msra.mxu0 0
    %1208 = vmatprep.subr.bf16.mxu0 0
    %1209 = vmatpush1.bf16.msra.mxu0 0
    %1210 = vmatprep.subr.bf16.mxu0 0
    %1211 = vmatpush1.bf16.msra.mxu0 0
    %1212 = vmatprep.subr.bf16.mxu0 0
    %1213 = vmatpush1.bf16.msra.mxu0 0
    %1214 = vmatprep.subr.bf16.mxu0 0
    %1215 = vmatpush1.bf16.msra.mxu0 0
    %1216 = vmatprep.subr.bf16.mxu0 0
    %1217 = vmatpush1.bf16.msra.mxu0 0
    %1218 = vmatprep.subr.bf16.mxu0 0
    %1219 = vmatpush1.bf16.msra.mxu0 0
    %1220 = vmatprep.mubr.bf16.mxu0 0
    %1221 = vmatmul.mubr.bf16.gmra.mrb[0].mxu0 %v1126
    %v1222 = vpop.f32.mrb[0].mxu0
    %v1223 = vadd.f32 %v1138, %v1222
    %v1224 = vpop.f32.mrb[0].mxu0
    %v1225 = vpop.f32.mrb[0].mxu0
    %v1226 = vadd.f32 %v1138, %v1225
    %v1227 = vpop.f32.mrb[0].mxu0
    %1228 = vmatprep.mubr.bf16.mxu0 0
    %1229 = vmatmul.mubr.bf16.gmra.mrb[0].mxu0 %v1127
    %v1230 = vpop.f32.mrb[0].mxu0
    %v1231 = vadd.f32 %v1138, %v1230
    %v1232 = vpop.f32.mrb[0].mxu0
    %v1233 = vpop.f32.mrb[0].mxu0
    %v1234 = vadd.f32 %v1138, %v1233
    %v1235 = vpop.f32.mrb[0].mxu0
    %1236 = vmatprep.mubr.bf16.mxu0 0
    %1237 = vmatmul.mubr.bf16.gmra.mrb[0].mxu0 %v1128
    %v1238 = vpop.f32.mrb[0].mxu0
    %v1239 = vadd.f32 %v1138, %v1238
    %v1240 = vpop.f32.mrb[0].mxu0
    %v1241 = vpop.f32.mrb[0].mxu0
    %v1242 = vadd.f32 %v1138, %v1241
    %v1243 = vpop.f32.mrb[0].mxu0
    %1244 = vmatprep.mubr.bf16.mxu0 0
    %1245 = vmatmul.mubr.bf16.gmra.mrb[0].mxu0 %v1129
    %v1246 = vpop.f32.mrb[0].mxu0
    %v1247 = vadd.f32 %v1138, %v1246
    %v1248 = vpop.f32.mrb[0].mxu0
    %v1249 = vpop.f32.mrb[0].mxu0
    %v1250 = vadd.f32 %v1138, %v1249
    %v1251 = vpop.f32.mrb[0].mxu0
    %1252 = vmatprep.mubr.bf16.mxu0 0
    %1253 = vmatmul.mubr.bf16.gmra.mrb[0].mxu0 %v1130
    %v1254 = vpop.f32.mrb[0].mxu0
    %v1255 = vadd.f32 %v1138, %v1254
    %v1256 = vpop.f32.mrb[0].mxu0
    %v1257 = vpop.f32.mrb[0].mxu0
    %v1258 = vadd.f32 %v1138, %v1257
    %v1259 = vpop.f32.mrb[0].mxu0
    %1260 = vmatprep.mubr.bf16.mxu0 0
    %1261 = vmatmul.mubr.bf16.gmra.mrb[0].mxu0 %v1131
    %v1262 = vpop.f32.mrb[0].mxu0
    %v1263 = vadd.f32 %v1138, %v1262
    %v1264 = vpop.f32.mrb[0].mxu0
    %v1265 = vpop.f32.mrb[0].mxu0
    %v1266 = vadd.f32 %v1138, %v1265
    %v1267 = vpop.f32.mrb[0].mxu0
    %1268 = vmatprep.mubr.bf16.mxu0 0
    %1269 = vmatmul.mubr.bf16.gmra.mrb[0].mxu0 %v1132
    %v1270 = vpop.f32.mrb[0].mxu0
    %v1271 = vadd.f32 %v1138, %v1270
    %v1272 = vpop.f32.mrb[0].mxu0
    %v1273 = vpop.f32.mrb[0].mxu0
    %v1274 = vadd.f32 %v1138, %v1273
    %v1275 = vpop.f32.mrb[0].mxu0
    %1276 = vmatprep.mubr.bf16.mxu0 0
    %1277 = vmatmul.mubr.bf16.gmra.mrb[0].mxu0 %v1133
    %v1278 = vpop.f32.mrb[0].mxu0
    %v1279 = vadd.f32 %v1138, %v1278
    %v1280 = vpop.f32.mrb[0].mxu0
    %v1281 = vpop.f32.mrb[0].mxu0
    %v1282 = vadd.f32 %v1138, %v1281
    %v1283 = vpop.f32.mrb[0].mxu0
    %1284 = vdwg.mxu0
    %1285 = vst [vmem:[#allocation8] sm:$0xff] %v1223
    %1286 = vst [vmem:[#allocation8 + $0x8] sm:$0xff] %v1226
    %1287 = vst [vmem:[#allocation8 + $0x10] sm:$0xff] %v1231
    %1288 = vst [vmem:[#allocation8 + $0x18] sm:$0xff] %v1234
    %1289 = vst [vmem:[#allocation8 + $0x20] sm:$0xff] %v1239
    %1290 = vst [vmem:[#allocation8 + $0x28] sm:$0xff] %v1242
    %1291 = vst [vmem:[#allocation8 + $0x30] sm:$0xff] %v1247
    %1292 = vst [vmem:[#allocation8 + $0x38] sm:$0xff] %v1250
    %1293 = vst [vmem:[#allocation8 + $0x40] sm:$0xff] %v1255
    %1294 = vst [vmem:[#allocation8 + $0x48] sm:$0xff] %v1258
    %1295 = vst [vmem:[#allocation8 + $0x50] sm:$0xff] %v1263
    %1296 = vst [vmem:[#allocation8 + $0x58] sm:$0xff] %v1266
    %1297 = vst [vmem:[#allocation8 + $0x60] sm:$0xff] %v1271
    %1298 = vst [vmem:[#allocation8 + $0x68] sm:$0xff] %v1274
    %1299 = vst [vmem:[#allocation8 + $0x70] sm:$0xff] %v1279
    %1300 = vst [vmem:[#allocation8 + $0x78] sm:$0xff] %v1282
    // Predicated region
    $region30: #{tpu_custom_call.1} parent=1 // pred_check
      _
    $region31: #{tpu_custom_call.1} parent=1 // pred_check_branch
      %1302 = sbr.rel (0) target = $region33
    $region32: #{tpu_custom_call.1} parent=1 // pred_region
      %s1304 = ssub.s32 2048, 2048
      %1305 = vsyncadd [#allocation4], %s1304
      %s1306 = sshll.u32 [#allocation8], 4
      %s1307 = int_to_ptr.vmem [resolvable:$true] %s1306
      %1312 = dma.vmem_to_hbm [thread:$0]  %s1307, 2048, %s4, [#allocation4], 128, 128, 8
    $region33: #{tpu_custom_call.1} parent=1 // pred_fallthru
      _
    // Predicated region
    $region34: #{tpu_custom_call.1} parent=1 // pred_check
      _
    $region35: #{tpu_custom_call.1} parent=1 // pred_check_branch
      %1314 = sbr.rel (0) target = $region37
    $region36: #{tpu_custom_call.1} parent=1 // pred_region
      %1315 = dma.done [#allocation4], 2048
    $region37: #{tpu_custom_call.1} parent=1 // pred_fallthru
      _
    %1316 = vsyncpa [#allocation3], 1
    %1317 = vsyncpa [#allocation6], 1
    %1318 = vsyncpa [#allocation4], 1

</llo_original>
